<compile_context>
chip_gen: v5e
topology: v5e:2x2
jax: 0.10.0
libtpu: 0.0.40
codegen_flags: <defaults>
</compile_context>

<pallas_src>
import jax
import jax.numpy as jnp
from jax.experimental import pallas as pl
from jax.experimental.pallas import tpu as pltpu


def mlp_kernel(x_ref, w1_ref, b1_ref, w2_ref, b2_ref, w3_ref, b3_ref, o_ref):
    x = x_ref[...].astype(jnp.float32)                       # (2, T), upcast on load

    # fc1 + ReLU: (16,2) @ (2,T) on the MXU, f32 accumulate; bias/ReLU on VPU.
    h1 = jnp.dot(w1_ref[...], x,
                 preferred_element_type=jnp.float32) + b1_ref[...]      # (16, T)
    h1 = jnp.maximum(h1, 0.0)

    # fc2 + ReLU: (16,16) @ (16,T) on the MXU.
    h2 = jnp.dot(w2_ref[...], h1,
                 preferred_element_type=jnp.float32) + b2_ref[...]      # (16, T)
    h2 = jnp.maximum(h2, 0.0)

    # fc3 + sigmoid: (1,16) @ (16,T) on the MXU; sigmoid on EUP.
    z = jnp.dot(w3_ref[...], h2,
                preferred_element_type=jnp.float32) + b3_ref[...]       # (1, T)
    o_ref[...] = jax.nn.sigmoid(z)


def _round_up(n, m):
    return ((n + m - 1) // m) * m


def dark_channel_net(x, params, *, block_n=65536, min_blocks=2,
                     x_dtype=jnp.bfloat16):
    """x: (N, 2) float32. params: PyTorch-native (out, in) weights + (out,) biases."""
    w1, b1, w2, b2, w3, b3 = params
    N = x.shape[0]

    # Lane-dense batch tile: multiple of 128, capped at block_n (fits default scoped
    # VMEM on all generations with the 32 MiB limit below), and sized so that at least
    # `min_blocks` grid steps exist whenever possible -> both v7x TensorCores get work.
    per_block = _round_up(pl.cdiv(max(N, 1), min_blocks), 128)
    T = max(128, min(block_n, per_block))
    n_blocks = pl.cdiv(N, T)
    Np = n_blocks * T

    # Single wrapper relayout pass: transpose + (optional) bf16 downcast + pad, fused
    # by XLA into one op.  Tail columns are zeros and get sliced off below.
    xt = jnp.pad(x.T.astype(x_dtype), ((0, 0), (0, Np - N)))            # (2, Np)

    # Biases as columns (lane-broadcast); fc3 weight stays PyTorch-native (1, 16).
    b1c = b1.reshape(16, 1)
    b2c = b2.reshape(16, 1)
    b3c = b3.reshape(1, 1)

    resident = lambda i: (0, 0)                  # weights/biases stay in VMEM

    out = pl.pallas_call(
        mlp_kernel,
        out_shape=jax.ShapeDtypeStruct((1, Np), jnp.float32),
        grid=(n_blocks,),
        in_specs=[
            pl.BlockSpec((2, T), lambda i: (0, i)),      # x tile (lane-dense)
            pl.BlockSpec((16, 2), resident),             # w1
            pl.BlockSpec((16, 1), resident),             # b1
            pl.BlockSpec((16, 16), resident),            # w2
            pl.BlockSpec((16, 1), resident),             # b2
            pl.BlockSpec((1, 16), resident),             # w3
            pl.BlockSpec((1, 1), resident),              # b3
        ],
        out_specs=pl.BlockSpec((1, T), lambda i: (0, i)),  # lane-dense output
        compiler_params=pltpu.CompilerParams(
            dimension_semantics=("parallel",),           # megacore split on v7x
            vmem_limit_bytes=32 * 1024 * 1024,           # clears v5e's 16 MiB default
        ),
    )(xt, w1, b1c, w2, b2c, w3, b3c)

    # (1, Np) -> (Np, 1) is a free reshape (same row-major layout); the slice only
    # copies 4*N bytes and disappears entirely when N is a multiple of the tile.
    return out.reshape(-1, 1)[:N]


def init_params(key):
    """Deterministic init with nn.Linear-native shapes: W (out, in), b (out,)."""
    ks = jax.random.split(key, 6)

    def linear(kw, kb, fan_in, fan_out):
        bound = 1.0 / jnp.sqrt(jnp.float32(fan_in))
        w = jax.random.uniform(kw, (fan_out, fan_in), jnp.float32, -bound, bound)
        b = jax.random.uniform(kb, (fan_out,), jnp.float32, -bound, bound)
        return w, b

    w1, b1 = linear(ks[0], ks[1], 2, 16)    # fc1: Linear(2, 16)
    w2, b2 = linear(ks[2], ks[3], 16, 16)   # fc2: Linear(16, 16)
    w3, b3 = linear(ks[4], ks[5], 16, 1)    # fc3: Linear(16, 1)
    return (w1, b1, w2, b2, w3, b3)


def reference(x, params):
    w1, b1, w2, b2, w3, b3 = params
    hp = jax.lax.Precision.HIGHEST
    h1 = jnp.maximum(jnp.dot(x, w1.T, precision=hp) + b1, 0.0)
    h2 = jnp.maximum(jnp.dot(h1, w2.T, precision=hp) + b2, 0.0)
    return jax.nn.sigmoid(jnp.dot(h2, w3.T, precision=hp) + b3)


if __name__ == "__main__":
    key = jax.random.PRNGKey(0)
    kx, kp = jax.random.split(key)

    N = 200                                  # small batch, non-multiple of 128 -> 2 blocks
    x = jax.random.normal(kx, (N, 2), jnp.float32)
    params = init_params(kp)
    ref = reference(x, params)

    # Exact-semantics path (f32 streaming): must match the reference module tightly.
    out_f32 = jax.block_until_ready(dark_channel_net(x, params, x_dtype=jnp.float32))
    assert out_f32.shape == (N, 1)
    err_f32 = float(jnp.max(jnp.abs(out_f32 - ref)))
    assert jnp.allclose(out_f32, ref, atol=1e-4, rtol=1e-4), err_f32

    # Default fast path (bf16-streamed input; math stays f32): compare against the
    # reference evaluated on the same quantized inputs, plus a loose sanity check.
    out_fast = jax.block_until_ready(dark_channel_net(x, params))
    xq = x.astype(jnp.bfloat16).astype(jnp.float32)
    ref_q = reference(xq, params)
    err_q = float(jnp.max(jnp.abs(out_fast - ref_q)))
    assert out_fast.shape == (N, 1)
    assert jnp.allclose(out_fast, ref_q, atol=1e-3, rtol=1e-3), err_q
    assert jnp.allclose(out_fast, ref, atol=5e-2, rtol=5e-2)

    print("KERNEL_OK")
</pallas_src>

<mosaic_0001>
module attributes {stable_mosaic.version = 11 : i64} {
  func.func @mlp_kernel(%arg0: i32, %arg1: memref<2x128xf32, #tpu.memory_space<vmem>>, %arg2: memref<16x2xf32, #tpu.memory_space<vmem>>, %arg3: memref<16x1xf32, #tpu.memory_space<vmem>>, %arg4: memref<16x16xf32, #tpu.memory_space<vmem>>, %arg5: memref<16x1xf32, #tpu.memory_space<vmem>>, %arg6: memref<1x16xf32, #tpu.memory_space<vmem>>, %arg7: memref<1x1xf32, #tpu.memory_space<vmem>>, %arg8: memref<1x128xf32, #tpu.memory_space<vmem>>) attributes {dimension_semantics = [#tpu.dimension_semantics<parallel>], iteration_bounds = array<i64: 2>, scalar_prefetch = 0 : i64, scratch_operands = 0 : i64, tpu.core_type = #tpu.core_type<tc>, window_params = [{transform_indices = @transform_0, window_bounds = array<i64: 2, 128>}, {pipeline_mode = #tpu.pipeline_mode<synchronous>, transform_indices = @transform_1, window_bounds = array<i64: 16, 2>}, {pipeline_mode = #tpu.pipeline_mode<synchronous>, transform_indices = @transform_2, window_bounds = array<i64: 16, 1>}, {pipeline_mode = #tpu.pipeline_mode<synchronous>, transform_indices = @transform_3, window_bounds = array<i64: 16, 16>}, {pipeline_mode = #tpu.pipeline_mode<synchronous>, transform_indices = @transform_4, window_bounds = array<i64: 16, 1>}, {pipeline_mode = #tpu.pipeline_mode<synchronous>, transform_indices = @transform_5, window_bounds = array<i64: 1, 16>}, {pipeline_mode = #tpu.pipeline_mode<synchronous>, transform_indices = @transform_6, window_bounds = array<i64: 1, 1>}, {transform_indices = @transform_7, window_bounds = array<i64: 1, 128>}]} {
    %c0 = arith.constant 0 : index
    %c0_0 = arith.constant 0 : index
    %0 = vector.load %arg1[%c0, %c0_0] : memref<2x128xf32, #tpu.memory_space<vmem>>, vector<2x128xf32>
    %c0_1 = arith.constant 0 : index
    %c0_2 = arith.constant 0 : index
    %1 = vector.load %arg2[%c0_1, %c0_2] : memref<16x2xf32, #tpu.memory_space<vmem>>, vector<16x2xf32>
    %cst = arith.constant dense<0.000000e+00> : vector<16x128xf32>
    %2 = tpu.matmul %1, %0, %cst {dimension_numbers = #tpu.dot_dimension_numbers<[1], [0], [0], [1], [0, 0, 1, 1], [], []>} : vector<16x2xf32>, vector<2x128xf32>, vector<16x128xf32> -> vector<16x128xf32>
    %c0_3 = arith.constant 0 : index
    %c0_4 = arith.constant 0 : index
    %3 = vector.load %arg3[%c0_3, %c0_4] : memref<16x1xf32, #tpu.memory_space<vmem>>, vector<16x1xf32>
    %4 = vector.broadcast %3 : vector<16x1xf32> to vector<16x128xf32>
    %5 = arith.addf %2, %4 : vector<16x128xf32>
    %cst_5 = arith.constant 0.000000e+00 : f32
    %6 = vector.broadcast %cst_5 : f32 to vector<16x128xf32>
    %7 = arith.maximumf %5, %6 : vector<16x128xf32>
    %c0_6 = arith.constant 0 : index
    %c0_7 = arith.constant 0 : index
    %8 = vector.load %arg4[%c0_6, %c0_7] : memref<16x16xf32, #tpu.memory_space<vmem>>, vector<16x16xf32>
    %cst_8 = arith.constant dense<0.000000e+00> : vector<16x128xf32>
    %9 = tpu.matmul %8, %7, %cst_8 {dimension_numbers = #tpu.dot_dimension_numbers<[1], [0], [0], [1], [0, 0, 1, 1], [], []>} : vector<16x16xf32>, vector<16x128xf32>, vector<16x128xf32> -> vector<16x128xf32>
    %c0_9 = arith.constant 0 : index
    %c0_10 = arith.constant 0 : index
    %10 = vector.load %arg5[%c0_9, %c0_10] : memref<16x1xf32, #tpu.memory_space<vmem>>, vector<16x1xf32>
    %11 = vector.broadcast %10 : vector<16x1xf32> to vector<16x128xf32>
    %12 = arith.addf %9, %11 : vector<16x128xf32>
    %cst_11 = arith.constant 0.000000e+00 : f32
    %13 = vector.broadcast %cst_11 : f32 to vector<16x128xf32>
    %14 = arith.maximumf %12, %13 : vector<16x128xf32>
    %c0_12 = arith.constant 0 : index
    %c0_13 = arith.constant 0 : index
    %15 = vector.load %arg6[%c0_12, %c0_13] : memref<1x16xf32, #tpu.memory_space<vmem>>, vector<1x16xf32>
    %cst_14 = arith.constant dense<0.000000e+00> : vector<1x128xf32>
    %16 = tpu.matmul %15, %14, %cst_14 {dimension_numbers = #tpu.dot_dimension_numbers<[1], [0], [0], [1], [0, 0, 1, 1], [], []>} : vector<1x16xf32>, vector<16x128xf32>, vector<1x128xf32> -> vector<1x128xf32>
    %c0_15 = arith.constant 0 : index
    %c0_16 = arith.constant 0 : index
    %17 = vector.load %arg7[%c0_15, %c0_16] : memref<1x1xf32, #tpu.memory_space<vmem>>, vector<1x1xf32>
    %18 = vector.broadcast %17 : vector<1x1xf32> to vector<1x128xf32>
    %19 = arith.addf %16, %18 : vector<1x128xf32>
    %20 = arith.negf %19 : vector<1x128xf32>
    %21 = math.exp %20 : vector<1x128xf32>
    %cst_17 = arith.constant 1.000000e+00 : f32
    %22 = vector.broadcast %cst_17 : f32 to vector<1x128xf32>
    %23 = arith.addf %22, %21 : vector<1x128xf32>
    %24 = arith.divf %22, %23 : vector<1x128xf32>
    %c0_18 = arith.constant 0 : index
    %c0_19 = arith.constant 0 : index
    %25 = vector.load %arg8[%c0_18, %c0_19] : memref<1x128xf32, #tpu.memory_space<vmem>>, vector<1x128xf32>
    tpu.vector_store %arg8[%c0_18, %c0_19], %24 {strides = array<i32>} : memref<1x128xf32, #tpu.memory_space<vmem>>, vector<1x128xf32>,
    return
  }
  func.func @transform_0(%arg0: i32) -> (i32, i32) {
    %c0_i32 = arith.constant 0 : i32
    %c0_i32_0 = arith.constant 0 : i32
    return %c0_i32, %arg0 : i32, i32
  }
  func.func @transform_1(%arg0: i32) -> (i32, i32) {
    %c0_i32 = arith.constant 0 : i32
    %c0_i32_0 = arith.constant 0 : i32
    %c0_i32_1 = arith.constant 0 : i32
    return %c0_i32, %c0_i32_0 : i32, i32
  }
  func.func @transform_2(%arg0: i32) -> (i32, i32) {
    %c0_i32 = arith.constant 0 : i32
    %c0_i32_0 = arith.constant 0 : i32
    %c0_i32_1 = arith.constant 0 : i32
    return %c0_i32, %c0_i32_0 : i32, i32
  }
  func.func @transform_3(%arg0: i32) -> (i32, i32) {
    %c0_i32 = arith.constant 0 : i32
    %c0_i32_0 = arith.constant 0 : i32
    %c0_i32_1 = arith.constant 0 : i32
    return %c0_i32, %c0_i32_0 : i32, i32
  }
  func.func @transform_4(%arg0: i32) -> (i32, i32) {
    %c0_i32 = arith.constant 0 : i32
    %c0_i32_0 = arith.constant 0 : i32
    %c0_i32_1 = arith.constant 0 : i32
    return %c0_i32, %c0_i32_0 : i32, i32
  }
  func.func @transform_5(%arg0: i32) -> (i32, i32) {
    %c0_i32 = arith.constant 0 : i32
    %c0_i32_0 = arith.constant 0 : i32
    %c0_i32_1 = arith.constant 0 : i32
    return %c0_i32, %c0_i32_0 : i32, i32
  }
  func.func @transform_6(%arg0: i32) -> (i32, i32) {
    %c0_i32 = arith.constant 0 : i32
    %c0_i32_0 = arith.constant 0 : i32
    %c0_i32_1 = arith.constant 0 : i32
    return %c0_i32, %c0_i32_0 : i32, i32
  }
  func.func @transform_7(%arg0: i32) -> (i32, i32) {
    %c0_i32 = arith.constant 0 : i32
    %c0_i32_0 = arith.constant 0 : i32
    return %c0_i32, %arg0 : i32, i32
  }
}

</mosaic_0001>

<llo_original>
// kernel: tpu_custom_call.1
$region0: #{tpu_custom_call.1}
  #allocation0 [shape = 'u32[]', space=smem, size = 0x4, offset = 0x4, fixed_abs, tag = 'smem constant byte address 0x4 - core index']
  #allocation1 [shape = 'u32[72,128]{1,0:T(1,128)}', space=vmem, size = 0x9000, scoped, tag = 'internal scratch']
  #allocation2 [shape = 'f32[1,1]{1,0:T(1,128)S(1)}', space=vmem, size = 0x200, scoped, tag = 'scoped memory for tpu_custom_call.1']
  %s0 = inlined_call_operand.vmem [shape: f32[2,256], index: 0, kind: input, shape index: {}]
  %s1 = inlined_call_operand.vmem [shape: f32[16,2], index: 1, kind: input, shape index: {}]
  %s2 = inlined_call_operand.vmem [shape: f32[16,1], index: 2, kind: input, shape index: {}]
  %s3 = inlined_call_operand.vmem [shape: f32[16,16], index: 3, kind: input, shape index: {}]
  %s4 = inlined_call_operand.vmem [shape: f32[16,1], index: 4, kind: input, shape index: {}]
  %s5 = inlined_call_operand.vmem [shape: f32[1,16], index: 5, kind: input, shape index: {}]
  %s6 = inlined_call_operand.<no memory space> [shape: f32[1,1], index: 6, kind: input, shape index: {}]
  %s7 = inlined_call_operand.hbm [shape: f32[1,256], index: 7, kind: output, shape index: {}]
  %s8 = sld [smem:[#allocation0]]
  $region61: #{tpu_custom_call.1} parent=0
    _
  %s10 = ssub.s32 1, %s8
  %s11 = scalar_select 0, %s10, %s8
  %v12 = vstv %s6
  %13 = vst [vmem:[#allocation2] sm:$0x1] %v12
  $region1: #{tpu_custom_call.1} parent=0
    #allocation3 [shape = 'u8[1024]{0}', space=vmem, size = 0x400, scoped, tag = 'output window, operand 0']
    #allocation4 [shape = 's32[2]{0}', space=sflag, size = 0x8, scoped, tag = 'scoped memory for tpu_custom_call.1']
    %14 = vsyncpa [#allocation4], 0
    %s15 = scalar_lea.sflag [#allocation4], 1
    %16 = vsyncpa %s15, 0
    loop: start=0, step=1, limit=4
    $region2: #{tpu_custom_call.1} parent=1 // loop_pre_header
      _
    $region3: #{tpu_custom_call.1} parent=1 // loop_header
      %s18 = sphi 0, %s22
      %p19 = scmp.ge.s32.totalorder %s18, 4
      %s28 = sphi 0, %s30
      %s31 = sphi 0, %s28
      %s32 = sphi 0, %s31
      %s48 = sphi 0, %s32
      %s52 = sphi 0, %s52
      %s54 = sphi 0, %s52
      %s55 = sphi 0, %s54
      %s69 = sphi 0, %s55
      %s73 = sphi 0, %s73
      %s75 = sphi 0, %s73
      %s76 = sphi 0, %s75
      %s90 = sphi 0, %s76
      %s94 = sphi 0, %s94
      %s96 = sphi 0, %s94
      %s97 = sphi 0, %s96
      %s111 = sphi 0, %s97
      %s115 = sphi 0, %s115
      %s117 = sphi 0, %s115
      %s118 = sphi 0, %s117
      %s132 = sphi 0, %s118
      %s136 = sphi 0, %s136
      %s138 = sphi 0, %s136
      %s139 = sphi 0, %s138
      %s153 = sphi 0, %s139
      %s157 = sphi 0, %s157
      %s159 = sphi 0, %s157
      %s160 = sphi 0, %s159
      %s174 = sphi 0, %s160
      %s180 = sphi 0, %s182
      %s183 = sphi 0, %s180
      %s184 = sphi 0, %s183
      %s200 = sphi 0, %s184
    $region4: #{tpu_custom_call.1} parent=1 // loop_header_branch
      %21 = sbr.rel (%p19) target = $region8
    $region5: #{tpu_custom_call.1} parent=1 // loop_body
      %s23 = ssub.s32 %s18, 1
      %s24 = ssub.s32 %s18, 2
      %s25 = sadd.s32 %s18, 1
      %s26 = ssub.s32 %s18, %s25
      %p27 = scmp.eq.s32.totalorder %s26, 0
      %s29 = sadd.s32 %s28, 1
      %s30 = scalar_select %p27, %s28, %s29
      %p33 = pneg %p27
      %p34 = scmp.eq.s32.totalorder %s18, 1
      %p35 = por %p33, %p34
      %p36 = scmp.ne.s32.totalorder %s28, %s31
      %p37 = scmp.eq.s32.totalorder %s18, 0
      %p38 = por %p36, %p37
      %p39 = scmp.ne.s32.totalorder %s28, %s31
      %p40 = scmp.eq.s32.totalorder %s23, 1
      %p41 = por %p39, %p40
      %p42 = scmp.ne.s32.totalorder %s31, %s32
      %p43 = scmp.eq.s32.totalorder %s23, 0
      %p44 = por %p42, %p43
      %p45 = scmp.ne.s32.totalorder %s31, %s32
      %p46 = scmp.eq.s32.totalorder %s24, 1
      %p47 = por %p45, %p46
      %p49 = scmp.ne.s32.totalorder %s32, %s48
      %p50 = scmp.eq.s32.totalorder %s24, 0
      %p51 = por %p49, %p50
      %s53 = sadd.s32 %s52, 1
      %p56 = scmp.eq.s32.totalorder %s18, 1
      %p57 = scmp.ne.s32.totalorder %s52, %s54
      %p58 = scmp.eq.s32.totalorder %s18, 0
      %p59 = por %p57, %p58
      %p60 = scmp.ne.s32.totalorder %s52, %s54
      %p61 = scmp.eq.s32.totalorder %s23, 1
      %p62 = por %p60, %p61
      %p63 = scmp.ne.s32.totalorder %s54, %s55
      %p64 = scmp.eq.s32.totalorder %s23, 0
      %p65 = por %p63, %p64
      %p66 = scmp.ne.s32.totalorder %s54, %s55
      %p67 = scmp.eq.s32.totalorder %s24, 1
      %p68 = por %p66, %p67
      %p70 = scmp.ne.s32.totalorder %s55, %s69
      %p71 = scmp.eq.s32.totalorder %s24, 0
      %p72 = por %p70, %p71
      %s74 = sadd.s32 %s73, 1
      %p77 = scmp.eq.s32.totalorder %s18, 1
      %p78 = scmp.ne.s32.totalorder %s73, %s75
      %p79 = scmp.eq.s32.totalorder %s18, 0
      %p80 = por %p78, %p79
      %p81 = scmp.ne.s32.totalorder %s73, %s75
      %p82 = scmp.eq.s32.totalorder %s23, 1
      %p83 = por %p81, %p82
      %p84 = scmp.ne.s32.totalorder %s75, %s76
      %p85 = scmp.eq.s32.totalorder %s23, 0
      %p86 = por %p84, %p85
      %p87 = scmp.ne.s32.totalorder %s75, %s76
      %p88 = scmp.eq.s32.totalorder %s24, 1
      %p89 = por %p87, %p88
      %p91 = scmp.ne.s32.totalorder %s76, %s90
      %p92 = scmp.eq.s32.totalorder %s24, 0
      %p93 = por %p91, %p92
      %s95 = sadd.s32 %s94, 1
      %p98 = scmp.eq.s32.totalorder %s18, 1
      %p99 = scmp.ne.s32.totalorder %s94, %s96
      %p100 = scmp.eq.s32.totalorder %s18, 0
      %p101 = por %p99, %p100
      %p102 = scmp.ne.s32.totalorder %s94, %s96
      %p103 = scmp.eq.s32.totalorder %s23, 1
      %p104 = por %p102, %p103
      %p105 = scmp.ne.s32.totalorder %s96, %s97
      %p106 = scmp.eq.s32.totalorder %s23, 0
      %p107 = por %p105, %p106
      %p108 = scmp.ne.s32.totalorder %s96, %s97
      %p109 = scmp.eq.s32.totalorder %s24, 1
      %p110 = por %p108, %p109
      %p112 = scmp.ne.s32.totalorder %s97, %s111
      %p113 = scmp.eq.s32.totalorder %s24, 0
      %p114 = por %p112, %p113
      %s116 = sadd.s32 %s115, 1
      %p119 = scmp.eq.s32.totalorder %s18, 1
      %p120 = scmp.ne.s32.totalorder %s115, %s117
      %p121 = scmp.eq.s32.totalorder %s18, 0
      %p122 = por %p120, %p121
      %p123 = scmp.ne.s32.totalorder %s115, %s117
      %p124 = scmp.eq.s32.totalorder %s23, 1
      %p125 = por %p123, %p124
      %p126 = scmp.ne.s32.totalorder %s117, %s118
      %p127 = scmp.eq.s32.totalorder %s23, 0
      %p128 = por %p126, %p127
      %p129 = scmp.ne.s32.totalorder %s117, %s118
      %p130 = scmp.eq.s32.totalorder %s24, 1
      %p131 = por %p129, %p130
      %p133 = scmp.ne.s32.totalorder %s118, %s132
      %p134 = scmp.eq.s32.totalorder %s24, 0
      %p135 = por %p133, %p134
      %s137 = sadd.s32 %s136, 1
      %p140 = scmp.eq.s32.totalorder %s18, 1
      %p141 = scmp.ne.s32.totalorder %s136, %s138
      %p142 = scmp.eq.s32.totalorder %s18, 0
      %p143 = por %p141, %p142
      %p144 = scmp.ne.s32.totalorder %s136, %s138
      %p145 = scmp.eq.s32.totalorder %s23, 1
      %p146 = por %p144, %p145
      %p147 = scmp.ne.s32.totalorder %s138, %s139
      %p148 = scmp.eq.s32.totalorder %s23, 0
      %p149 = por %p147, %p148
      %p150 = scmp.ne.s32.totalorder %s138, %s139
      %p151 = scmp.eq.s32.totalorder %s24, 1
      %p152 = por %p150, %p151
      %p154 = scmp.ne.s32.totalorder %s139, %s153
      %p155 = scmp.eq.s32.totalorder %s24, 0
      %p156 = por %p154, %p155
      %s158 = sadd.s32 %s157, 1
      %p161 = scmp.eq.s32.totalorder %s18, 1
      %p162 = scmp.ne.s32.totalorder %s157, %s159
      %p163 = scmp.eq.s32.totalorder %s18, 0
      %p164 = por %p162, %p163
      %p165 = scmp.ne.s32.totalorder %s157, %s159
      %p166 = scmp.eq.s32.totalorder %s23, 1
      %p167 = por %p165, %p166
      %p168 = scmp.ne.s32.totalorder %s159, %s160
      %p169 = scmp.eq.s32.totalorder %s23, 0
      %p170 = por %p168, %p169
      %p171 = scmp.ne.s32.totalorder %s159, %s160
      %p172 = scmp.eq.s32.totalorder %s24, 1
      %p173 = por %p171, %p172
      %p175 = scmp.ne.s32.totalorder %s160, %s174
      %p176 = scmp.eq.s32.totalorder %s24, 0
      %p177 = por %p175, %p176
      %s178 = ssub.s32 %s18, %s25
      %p179 = scmp.eq.s32.totalorder %s178, 0
      %s181 = sadd.s32 %s180, 1
      %s182 = scalar_select %p179, %s180, %s181
      %p185 = pneg %p179
      %p186 = scmp.eq.s32.totalorder %s18, 1
      %p187 = por %p185, %p186
      %p188 = scmp.ne.s32.totalorder %s180, %s183
      %p189 = scmp.eq.s32.totalorder %s18, 0
      %p190 = por %p188, %p189
      %p191 = scmp.ne.s32.totalorder %s180, %s183
      %p192 = scmp.eq.s32.totalorder %s23, 1
      %p193 = por %p191, %p192
      %p194 = scmp.ne.s32.totalorder %s183, %s184
      %p195 = scmp.eq.s32.totalorder %s23, 0
      %p196 = por %p194, %p195
      %p197 = scmp.ne.s32.totalorder %s183, %s184
      %p198 = scmp.eq.s32.totalorder %s24, 1
      %p199 = por %p197, %p198
      %p201 = scmp.ne.s32.totalorder %s184, %s200
      %p202 = scmp.eq.s32.totalorder %s24, 0
      %p203 = por %p201, %p202
      %p204 = scmp.le.s32.totalorder 1, %s18
      %p205 = scmp.lt.s32.totalorder %s18, 3
      %p206 = pnand %p204, %p205
      %p207 = pneg %p206
      // Predicated region
      $region9: #{tpu_custom_call.1} parent=5 // pred_check
        _
      $region10: #{tpu_custom_call.1} parent=5 // pred_check_branch
        %209 = sbr.rel (%p206) target = $region12
      $region11: #{tpu_custom_call.1} parent=5 // pred_region
        %s210 = ssub.s32 %s18, 1
        // Predicated region
        $region13: #{tpu_custom_call.1} parent=11 // pred_check
          %p211 = pneg %p65
        $region14: #{tpu_custom_call.1} parent=11 // pred_check_branch
          %213 = sbr.rel (%p211) target = $region16
        $region15: #{tpu_custom_call.1} parent=11 // pred_region
          _
        $region16: #{tpu_custom_call.1} parent=11 // pred_fallthru
          _
        // Predicated region
        $region17: #{tpu_custom_call.1} parent=11 // pred_check
          %p214 = pneg %p86
        $region18: #{tpu_custom_call.1} parent=11 // pred_check_branch
          %216 = sbr.rel (%p214) target = $region20
        $region19: #{tpu_custom_call.1} parent=11 // pred_region
          _
        $region20: #{tpu_custom_call.1} parent=11 // pred_fallthru
          _
        // Predicated region
        $region21: #{tpu_custom_call.1} parent=11 // pred_check
          %p217 = pneg %p107
        $region22: #{tpu_custom_call.1} parent=11 // pred_check_branch
          %219 = sbr.rel (%p217) target = $region24
        $region23: #{tpu_custom_call.1} parent=11 // pred_region
          _
        $region24: #{tpu_custom_call.1} parent=11 // pred_fallthru
          _
        // Predicated region
        $region25: #{tpu_custom_call.1} parent=11 // pred_check
          %p220 = pneg %p128
        $region26: #{tpu_custom_call.1} parent=11 // pred_check_branch
          %222 = sbr.rel (%p220) target = $region28
        $region27: #{tpu_custom_call.1} parent=11 // pred_region
          _
        $region28: #{tpu_custom_call.1} parent=11 // pred_fallthru
          _
        // Predicated region
        $region29: #{tpu_custom_call.1} parent=11 // pred_check
          %p223 = pneg %p149
        $region30: #{tpu_custom_call.1} parent=11 // pred_check_branch
          %225 = sbr.rel (%p223) target = $region32
        $region31: #{tpu_custom_call.1} parent=11 // pred_region
          _
        $region32: #{tpu_custom_call.1} parent=11 // pred_fallthru
          _
        // Predicated region
        $region33: #{tpu_custom_call.1} parent=11 // pred_check
          %p226 = pneg %p170
        $region34: #{tpu_custom_call.1} parent=11 // pred_check_branch
          %228 = sbr.rel (%p226) target = $region36
        $region35: #{tpu_custom_call.1} parent=11 // pred_region
          _
        $region36: #{tpu_custom_call.1} parent=11 // pred_fallthru
          _
      $region12: #{tpu_custom_call.1} parent=5 // pred_fallthru
        _
      %p229 = scmp.lt.s32.totalorder %s18, 2
      // Predicated region
      $region37: #{tpu_custom_call.1} parent=5 // pred_check
        %p230 = pneg %p229
      $region38: #{tpu_custom_call.1} parent=5 // pred_check_branch
        %232 = sbr.rel (%p230) target = $region40
      $region39: #{tpu_custom_call.1} parent=5 // pred_region
        // Predicated region
        $region41: #{tpu_custom_call.1} parent=39 // pred_check
          %p233 = pneg %p38
        $region42: #{tpu_custom_call.1} parent=39 // pred_check_branch
          %235 = sbr.rel (%p233) target = $region44
        $region43: #{tpu_custom_call.1} parent=39 // pred_region
          %p236 = scmp.lt.s32.totalorder %s18, 1
          %s237 = scalar_select %p236, %s18, 1
          %s238 = smul.addr %s237, 2
          %s239 = scalar_lea.vmem %s0, %s238
        $region44: #{tpu_custom_call.1} parent=39 // pred_fallthru
          _
      $region40: #{tpu_custom_call.1} parent=5 // pred_fallthru
        _
      %p240 = scmp.le.s32.totalorder 1, %s18
      %p241 = scmp.lt.s32.totalorder %s18, 3
      %p242 = pnand %p240, %p241
      %p243 = pneg %p242
      // Predicated region
      $region45: #{tpu_custom_call.1} parent=5 // pred_check
        _
      $region46: #{tpu_custom_call.1} parent=5 // pred_check_branch
        %245 = sbr.rel (%p242) target = $region48
      $region47: #{tpu_custom_call.1} parent=5 // pred_region
        %s246 = ssub.s32 %s18, 1
        %p247 = scmp.lt.s32.totalorder %s23, 1
        %s248 = scalar_select %p247, %s23, 1
        %s249 = smul.addr %s248, 2
        %s250 = scalar_lea.vmem %s0, %s249
        %p251 = pneg %p44
        %p252 = pneg %p41
        %p253 = pneg %p65
        %p254 = pneg %p62
        %p255 = pneg %p86
        %p256 = pneg %p83
        %p257 = pneg %p107
        %p258 = pneg %p104
        %p259 = pneg %p128
        %p260 = pneg %p125
        %p261 = pneg %p149
        %p262 = pneg %p146
        %p263 = pneg %p170
        %p264 = pneg %p167
        %p265 = pneg %p196
        %p266 = pneg %p193
        %s267 = sand.u32 %s183, 1
        %s268 = scalar_lea.sflag [#allocation4], %s267
        %s269 = sand.u32 %s183, 1
        %s270 = scalar_lea.vmem [#allocation3], %s269
        %p271 = scmp.lt.s32.totalorder %s23, 1
        %s272 = scalar_select %p271, %s23, 1
        %s273 = smul.addr %s272, 2
        %s274 = scalar_lea.vmem %s0, %s273
        %v275 = vld [vmem:[%s274] sm:$0x3]
        %v276 = vld [vmem:[%s1] sm:$0xff]
        %v277 = vld [vmem:[%s1 + $0x8] sm:$0xff]
        %v278 = vld [vmem:[%s2] sm:$0xff]
        %v279 = vld [vmem:[%s2 + $0x8] sm:$0xff]
        %281 = vset.pattern.permute.xlu0 0
        %282 = vperm.xlu0 %281, %v278
        %v283 = vpop.permute.xlu0 %282
        %286 = vset.pattern.permute.xlu0 0
        %287 = vperm.xlu0 %286, %v279
        %v288 = vpop.permute.xlu0 %287
        %vm290 = vcmask 15360
        %v292 = vsel %vm290, %v276, 0
        %v295 = vsel %vm290, %v277, 0
        %vm297 = vcmask 1041408
        %v299 = vsel %vm297, %v275, 0
        %301 = vmatpush.msra.mxu0 0.0
        %302 = vmatpush.msra.mxu0 0.0
        %303 = vmatpush.msra.mxu0 0.0
        %304 = vmatpush.msra.mxu0 0.0
        %305 = vmatpush.msra.mxu0 0.0
        %306 = vmatpush.msra.mxu0 0.0
        %307 = vmatpush.msra.mxu0 0.0
        %308 = vmatpush.msra.mxu0 0.0
        %309 = vmatpush.msra.mxu0 0.0
        %310 = vmatpush.msra.mxu0 0.0
        %311 = vmatpush.msra.mxu0 0.0
        %312 = vmatpush.msra.mxu0 0.0
        %313 = vmatpush.msra.mxu0 0.0
        %314 = vmatpush.msra.mxu0 0.0
        %315 = vmatpush.msra.mxu0 0.0
        %316 = vmatpush.msra.mxu0 %v299
        %317 = vmatmul.f32.gmra.mxu0 %v292
        %v318 = vpop.f32.mrf.mxu0
        %v319 = vadd.f32 %v283, %v318
        %320 = vmatmul.f32.gmra.mxu0 %v295
        %v321 = vpop.f32.mrf.mxu0
        %v322 = vadd.f32 %v288, %v321
        %323 = vdwg.mxu0
        %v324 = vmax.f32 %v319, 0.0
        %v325 = vmax.f32 %v322, 0.0
        %v326 = vld [vmem:[%s3] sm:$0xff]
        %v327 = vld [vmem:[%s3 + $0x8] sm:$0xff]
        %v328 = vld [vmem:[%s4] sm:$0xff]
        %v329 = vld [vmem:[%s4 + $0x8] sm:$0xff]
        %331 = vset.pattern.permute.xlu0 0
        %332 = vperm.xlu0 %331, %v328
        %v333 = vpop.permute.xlu0 %332
        %336 = vset.pattern.permute.xlu0 0
        %337 = vperm.xlu0 %336, %v329
        %v338 = vpop.permute.xlu0 %337
        %vm340 = vcmask 130048
        %v342 = vsel %vm340, %v326, 0
        %v345 = vsel %vm340, %v327, 0
        %347 = vmatpush.msra.mxu0 0.0
        %348 = vmatpush.msra.mxu0 0.0
        %349 = vmatpush.msra.mxu0 0.0
        %350 = vmatpush.msra.mxu0 0.0
        %351 = vmatpush.msra.mxu0 0.0
        %352 = vmatpush.msra.mxu0 0.0
        %353 = vmatpush.msra.mxu0 0.0
        %354 = vmatpush.msra.mxu0 0.0
        %355 = vmatpush.msra.mxu0 0.0
        %356 = vmatpush.msra.mxu0 0.0
        %357 = vmatpush.msra.mxu0 0.0
        %358 = vmatpush.msra.mxu0 0.0
        %359 = vmatpush.msra.mxu0 0.0
        %360 = vmatpush.msra.mxu0 0.0
        %361 = vmatpush.msra.mxu0 %v325
        %362 = vmatpush.msra.mxu0 %v324
        %363 = vmatmul.f32.gmra.mxu0 %v342
        %v364 = vpop.f32.mrf.mxu0
        %v365 = vadd.f32 %v333, %v364
        %366 = vmatmul.f32.gmra.mxu0 %v345
        %v367 = vpop.f32.mrf.mxu0
        %v368 = vadd.f32 %v338, %v367
        %369 = vdwg.mxu0
        %v370 = vmax.f32 %v365, 0.0
        %v371 = vmax.f32 %v368, 0.0
        %v372 = vld [vmem:[%s5] sm:$0x1]
        %v373 = vld [vmem:[#allocation2] sm:$0x1]
        %375 = vset.pattern.permute.xlu0 0
        %376 = vperm.xlu0 %375, %v373
        %v377 = vpop.permute.xlu0 %376
        %v379 = vperm.slane %v377, 0
        %v381 = vsel %vm340, %v372, 0
        %383 = vmatpush.msra.mxu0 0.0
        %384 = vmatpush.msra.mxu0 0.0
        %385 = vmatpush.msra.mxu0 0.0
        %386 = vmatpush.msra.mxu0 0.0
        %387 = vmatpush.msra.mxu0 0.0
        %388 = vmatpush.msra.mxu0 0.0
        %389 = vmatpush.msra.mxu0 0.0
        %390 = vmatpush.msra.mxu0 0.0
        %391 = vmatpush.msra.mxu0 0.0
        %392 = vmatpush.msra.mxu0 0.0
        %393 = vmatpush.msra.mxu0 0.0
        %394 = vmatpush.msra.mxu0 0.0
        %395 = vmatpush.msra.mxu0 0.0
        %396 = vmatpush.msra.mxu0 0.0
        %397 = vmatpush.msra.mxu0 %v371
        %398 = vmatpush.msra.mxu0 %v370
        %399 = vmatmul.f32.gmra.mxu0 %v381
        %v400 = vpop.f32.mrf.mxu0
        %v401 = vadd.f32 %v379, %v400
        %402 = vdwg.mxu0
        %v403 = vxor.u32 %v401, 2147483648
        %v404 = vmul.f32 %v403, 1.442695
        %v405 = vpow.pop %v404
        %v406 = vadd.f32 %v405, 1.0
        %v407 = vrcp.pop %v406
        %v408 = vmul.f32 %v406, %v407
        %v409 = vsub.f32 1.0, %v408
        %v410 = vmul.f32 %v407, %v409
        %v411 = vadd.f32 %v407, %v410
        %vm412 = vweird.f32 %v406
        %vm413 = vweird.f32 %v407
        %vm414 = vmor %vm412, %vm413
        %v415 = vsel %vm414, %v407, %v411
        %v416 = vand.u32 2147483647, %v406
        %vm417 = vcmp.eq.f32.partialorder %v416, 8.507059e+37
        %v418 = vand.u32 %v406, 2147483648
        %v419 = vor.u32 1.1754944e-38, %v418
        %v420 = vsel %vm417, %v419, %v415
        %v421 = vmul.f32 1.0, %v420
        %422 = vst [vmem:[%s270] sm:$0x1] %v421
        %s423 = sand.u32 %s183, 1
        %s424 = scalar_lea.sflag [#allocation4], %s423
        %s425 = sand.u32 %s183, 1
        %s426 = scalar_lea.vmem [#allocation3], %s425
        // Predicated region
        $region49: #{tpu_custom_call.1} parent=47 // pred_check
          %p427 = pneg %p193
        $region50: #{tpu_custom_call.1} parent=47 // pred_check_branch
          %429 = sbr.rel (%p427) target = $region52
        $region51: #{tpu_custom_call.1} parent=47 // pred_region
          %431 = vsyncadd %s424, 0
          %s432 = scalar_lea.hbm %s7, %s23
          %s434 = sshll.u32 %s426, 4
          %s435 = int_to_ptr.vmem [resolvable:$true] %s434
          %s436 = sshll.u32 %s432, 4
          %s437 = int_to_ptr.hbm [resolvable:$true] %s436
          %439 = dma.vmem_to_hbm [thread:$0]  %s435, 16, %s437, %s424
        $region52: #{tpu_custom_call.1} parent=47 // pred_fallthru
          _
      $region48: #{tpu_custom_call.1} parent=5 // pred_fallthru
        _
      %p440 = scmp.le.s32.totalorder 2, %s18
      // Predicated region
      $region53: #{tpu_custom_call.1} parent=5 // pred_check
        %p441 = pneg %p440
      $region54: #{tpu_custom_call.1} parent=5 // pred_check_branch
        %443 = sbr.rel (%p441) target = $region56
      $region55: #{tpu_custom_call.1} parent=5 // pred_region
        %s444 = ssub.s32 %s18, 2
        // Predicated region
        $region57: #{tpu_custom_call.1} parent=55 // pred_check
          %p445 = pneg %p199
        $region58: #{tpu_custom_call.1} parent=55 // pred_check_branch
          %447 = sbr.rel (%p445) target = $region60
        $region59: #{tpu_custom_call.1} parent=55 // pred_region
          %s448 = sand.u32 %s184, 1
          %s449 = scalar_lea.sflag [#allocation4], %s448
          %s450 = sand.u32 %s184, 1
          %s451 = scalar_lea.vmem [#allocation3], %s450
          %453 = dma.done %s449, 16
        $region60: #{tpu_custom_call.1} parent=55 // pred_fallthru
          _
      $region56: #{tpu_custom_call.1} parent=5 // pred_fallthru
        _
    $region6: #{tpu_custom_call.1} parent=1 // loop_footer
      %s22 = sadd.s32 1, %s18
    $region7: #{tpu_custom_call.1} parent=1 // loop_footer_branch
      %17 = sbr.rel target = $region3
    $region8: #{tpu_custom_call.1} parent=1 // loop_exit
      _
    %454 = vsyncpa [#allocation4], 1
    %s455 = scalar_lea.sflag [#allocation4], 1
    %456 = vsyncpa %s455, 1

</llo_original>
